<compile_context>
chip_gen: v7x
topology: tpu7x:2x2x1
jax: 0.10.0
libtpu: 0.0.40
codegen_flags: <defaults>
</compile_context>

<pallas_src>
import jax
import jax.numpy as jnp
from jax.experimental import pallas as pl
from jax.experimental.pallas import tpu as pltpu


# ------------------------- helpers -------------------------

def _round_up(x, m):
    return ((x + m - 1) // m) * m


def _pad2(a, rows, cols):
    return jnp.pad(a, ((0, rows - a.shape[0]), (0, cols - a.shape[1])))


# ------------------------- fused kernel -------------------------

def _make_decoder_kernel(block_meta):
    """block_meta: tuple of ("proj"|"id", padded_out_sz) per ResidualBlock."""

    def kernel(x_ref, *refs):
        o_ref = refs[-1]
        prefs = refs[:-1]

        x_f32 = x_ref[...]                       # (tile_n, F) f32 activation
        idx = 0
        for kind, out_p in block_meta:
            w = prefs[idx][...]                  # bf16, (F_in, out_p) or (F_in, 2*out_p)
            b = prefs[idx + 1][...]              # f32
            idx += 2
            y = jnp.dot(x_f32.astype(jnp.bfloat16), w,
                        preferred_element_type=jnp.float32) + b
            if kind == "proj":
                # fused main-path + residual-projection matmul; split halves
                h = jnp.maximum(y[:, :out_p], 0.0)       # Linear+BN(folded)+ReLU
                x_f32 = h + y[:, out_p:]                 # + residual projection
            else:
                x_f32 = jnp.maximum(y, 0.0) + x_f32      # + identity residual
            # Dropout = identity (eval mode)

        wo = prefs[idx][...]
        bo = prefs[idx + 1][...]
        o_ref[...] = (
            jnp.dot(x_f32.astype(jnp.bfloat16), wo,
                    preferred_element_type=jnp.float32) + bo
        ).astype(o_ref.dtype)

    return kernel


# ------------------------- parameter setup -------------------------

def _linear_init(key, in_sz, out_sz):
    """PyTorch nn.Linear default init: U(-1/sqrt(in), 1/sqrt(in))."""
    kw, kb = jax.random.split(key)
    bound = 1.0 / jnp.sqrt(jnp.float32(in_sz))
    # stored pre-transposed as (in_sz, out_sz) so kernel does x @ W
    w = jax.random.uniform(kw, (in_sz, out_sz), jnp.float32, -bound, bound)
    b = jax.random.uniform(kb, (1, out_sz), jnp.float32, -bound, bound)
    return w, b


def _bn_scale_shift(key, out_sz, eps=1e-5):
    """Deterministic (non-trivial) eval-mode BN params folded to scale/shift."""
    k1, k2, k3, k4 = jax.random.split(key, 4)
    gamma = 1.0 + 0.1 * jax.random.normal(k1, (1, out_sz), jnp.float32)
    beta = 0.1 * jax.random.normal(k2, (1, out_sz), jnp.float32)
    running_mean = 0.1 * jax.random.normal(k3, (1, out_sz), jnp.float32)
    running_var = 1.0 + 0.1 * jax.random.uniform(k4, (1, out_sz), jnp.float32)
    scale = gamma / jnp.sqrt(running_var + eps)
    shift = beta - running_mean * scale
    return scale, shift


def init_base_decoder(key, latent_sz, hidden_layers, out_sz, eps=1e-5):
    sizes = [latent_sz] + list(hidden_layers)
    flat_params = []
    block_meta = []

    for i in range(1, len(sizes)):
        key, k_lin, k_bn, k_res = jax.random.split(key, 4)
        in_sz, o_sz = sizes[i - 1], sizes[i]
        in_p, out_p = _round_up(in_sz, 128), _round_up(o_sz, 128)

        w, b = _linear_init(k_lin, in_sz, o_sz)
        scale, shift = _bn_scale_shift(k_bn, o_sz, eps)
        # fold eval-mode BN into the Linear: y = x @ (W*scale) + (b*scale+shift)
        wf = w * scale
        bf = b * scale + shift

        if in_sz != o_sz:   # projection residual -> merge into one matmul
            wr, br = _linear_init(k_res, in_sz, o_sz)
            w_cat = jnp.concatenate(
                [_pad2(wf, in_p, out_p), _pad2(wr, in_p, out_p)], axis=1)
            b_cat = jnp.concatenate(
                [_pad2(bf, 1, out_p), _pad2(br, 1, out_p)], axis=1)
            flat_params += [w_cat.astype(jnp.bfloat16), b_cat]
            block_meta.append(("proj", out_p))
        else:               # identity residual
            flat_params += [_pad2(wf, in_p, out_p).astype(jnp.bfloat16),
                            _pad2(bf, 1, out_p)]
            block_meta.append(("id", out_p))

    key, k_out = jax.random.split(key)
    wo, bo = _linear_init(k_out, hidden_layers[-1], out_sz)
    hid_p = _round_up(hidden_layers[-1], 128)
    out_p = _round_up(out_sz, 128)
    flat_params += [_pad2(wo, hid_p, out_p).astype(jnp.bfloat16),
                    _pad2(bo, 1, out_p)]

    return dict(flat=flat_params, meta=tuple(block_meta),
                latent_sz=latent_sz, latent_p=_round_up(latent_sz, 128),
                out_sz=out_sz, out_p=out_p)


# ------------------------- forward -------------------------

def base_decoder_forward(params, z):
    n = z.shape[0]
    latent_p = params["latent_p"]
    out_p = params["out_p"]
    flat = params["flat"]

    # batch tiling: big lane-dense tiles for real batches, tiny tile otherwise
    tile_n = min(512, _round_up(n, 8))
    n_pad = _round_up(n, tile_n)

    z_p = jnp.zeros((n_pad, latent_p), jnp.float32)
    z_p = z_p.at[:n, :z.shape[1]].set(z.astype(jnp.float32))

    kernel = _make_decoder_kernel(params["meta"])

    in_specs = [pl.BlockSpec((tile_n, latent_p), lambda i: (i, 0))]
    for p in flat:
        # full-array weight/bias blocks, same block every grid step ->
        # VMEM-resident across the batch grid (no re-DMA).
        in_specs.append(pl.BlockSpec(p.shape, lambda i: (0, 0)))

    y = pl.pallas_call(
        kernel,
        out_shape=jax.ShapeDtypeStruct((n_pad, out_p), jnp.float32),
        grid=(n_pad // tile_n,),
        in_specs=in_specs,
        out_specs=pl.BlockSpec((tile_n, out_p), lambda i: (i, 0)),
        compiler_params=pltpu.CompilerParams(
            dimension_semantics=("parallel",),          # shard batch over TCs (v7x)
            vmem_limit_bytes=64 * 1024 * 1024,
        ),
    )(z_p, *flat)

    return y[:n, :params["out_sz"]]


# ------------------------- demo -------------------------

if __name__ == "__main__":
    key = jax.random.PRNGKey(0)
    k_params, k_z = jax.random.split(key)

    batch = 8
    latent_sz = 32
    hidden_layers = [64, 64]
    out_sz = 128

    params = init_base_decoder(k_params, latent_sz, hidden_layers, out_sz)
    z = jax.random.normal(k_z, (batch, latent_sz), jnp.float32)

    y = base_decoder_forward(params, z)
    jax.block_until_ready(y)
    assert y.shape == (batch, out_sz)
    assert bool(jnp.all(jnp.isfinite(y)))
    print("KERNEL_OK")
</pallas_src>

<mosaic_0001>
module attributes {stable_mosaic.version = 11 : i64} {
  func.func @kernel(%arg0: i32, %arg1: memref<8x128xf32, #tpu.memory_space<vmem>>, %arg2: memref<128x256xbf16, #tpu.memory_space<vmem>>, %arg3: memref<1x256xf32, #tpu.memory_space<vmem>>, %arg4: memref<128x128xbf16, #tpu.memory_space<vmem>>, %arg5: memref<1x128xf32, #tpu.memory_space<vmem>>, %arg6: memref<128x128xbf16, #tpu.memory_space<vmem>>, %arg7: memref<1x128xf32, #tpu.memory_space<vmem>>, %arg8: memref<8x128xf32, #tpu.memory_space<vmem>>) attributes {dimension_semantics = [#tpu.dimension_semantics<parallel>], iteration_bounds = array<i64: 1>, scalar_prefetch = 0 : i64, scratch_operands = 0 : i64, tpu.core_type = #tpu.core_type<tc>, window_params = [{transform_indices = @transform_0, window_bounds = array<i64: 8, 128>}, {pipeline_mode = #tpu.pipeline_mode<synchronous>, transform_indices = @transform_1, window_bounds = array<i64: 128, 256>}, {pipeline_mode = #tpu.pipeline_mode<synchronous>, transform_indices = @transform_2, window_bounds = array<i64: 1, 256>}, {pipeline_mode = #tpu.pipeline_mode<synchronous>, transform_indices = @transform_3, window_bounds = array<i64: 128, 128>}, {pipeline_mode = #tpu.pipeline_mode<synchronous>, transform_indices = @transform_4, window_bounds = array<i64: 1, 128>}, {pipeline_mode = #tpu.pipeline_mode<synchronous>, transform_indices = @transform_5, window_bounds = array<i64: 128, 128>}, {pipeline_mode = #tpu.pipeline_mode<synchronous>, transform_indices = @transform_6, window_bounds = array<i64: 1, 128>}, {transform_indices = @transform_7, window_bounds = array<i64: 8, 128>}]} {
    %c0 = arith.constant 0 : index
    %c0_0 = arith.constant 0 : index
    %0 = vector.load %arg1[%c0, %c0_0] : memref<8x128xf32, #tpu.memory_space<vmem>>, vector<8x128xf32>
    %c0_1 = arith.constant 0 : index
    %c0_2 = arith.constant 0 : index
    %1 = vector.load %arg2[%c0_1, %c0_2] : memref<128x256xbf16, #tpu.memory_space<vmem>>, vector<128x256xbf16>
    %c0_3 = arith.constant 0 : index
    %c0_4 = arith.constant 0 : index
    %2 = vector.load %arg3[%c0_3, %c0_4] : memref<1x256xf32, #tpu.memory_space<vmem>>, vector<1x256xf32>
    %3 = arith.truncf %0 : vector<8x128xf32> to vector<8x128xbf16>
    %cst = arith.constant dense<0.000000e+00> : vector<8x256xf32>
    %4 = tpu.matmul %3, %1, %cst {dimension_numbers = #tpu.dot_dimension_numbers<[1], [0], [0], [1], [0, 0, 1, 1], [], []>} : vector<8x128xbf16>, vector<128x256xbf16>, vector<8x256xf32> -> vector<8x256xf32>
    %5 = vector.broadcast %2 : vector<1x256xf32> to vector<8x256xf32>
    %6 = arith.addf %4, %5 : vector<8x256xf32>
    %7 = vector.extract_strided_slice %6 {offsets = [0, 0], sizes = [8, 128], strides = [1, 1]} : vector<8x256xf32> to vector<8x128xf32>
    %cst_5 = arith.constant 0.000000e+00 : f32
    %8 = vector.broadcast %cst_5 : f32 to vector<8x128xf32>
    %9 = arith.maximumf %7, %8 : vector<8x128xf32>
    %10 = vector.extract_strided_slice %6 {offsets = [0, 128], sizes = [8, 128], strides = [1, 1]} : vector<8x256xf32> to vector<8x128xf32>
    %11 = arith.addf %9, %10 : vector<8x128xf32>
    %c0_6 = arith.constant 0 : index
    %c0_7 = arith.constant 0 : index
    %12 = vector.load %arg4[%c0_6, %c0_7] : memref<128x128xbf16, #tpu.memory_space<vmem>>, vector<128x128xbf16>
    %c0_8 = arith.constant 0 : index
    %c0_9 = arith.constant 0 : index
    %13 = vector.load %arg5[%c0_8, %c0_9] : memref<1x128xf32, #tpu.memory_space<vmem>>, vector<1x128xf32>
    %14 = arith.truncf %11 : vector<8x128xf32> to vector<8x128xbf16>
    %cst_10 = arith.constant dense<0.000000e+00> : vector<8x128xf32>
    %15 = tpu.matmul %14, %12, %cst_10 {dimension_numbers = #tpu.dot_dimension_numbers<[1], [0], [0], [1], [0, 0, 1, 1], [], []>} : vector<8x128xbf16>, vector<128x128xbf16>, vector<8x128xf32> -> vector<8x128xf32>
    %16 = vector.broadcast %13 : vector<1x128xf32> to vector<8x128xf32>
    %17 = arith.addf %15, %16 : vector<8x128xf32>
    %cst_11 = arith.constant 0.000000e+00 : f32
    %18 = vector.broadcast %cst_11 : f32 to vector<8x128xf32>
    %19 = arith.maximumf %17, %18 : vector<8x128xf32>
    %20 = arith.addf %19, %11 : vector<8x128xf32>
    %c0_12 = arith.constant 0 : index
    %c0_13 = arith.constant 0 : index
    %21 = vector.load %arg6[%c0_12, %c0_13] : memref<128x128xbf16, #tpu.memory_space<vmem>>, vector<128x128xbf16>
    %c0_14 = arith.constant 0 : index
    %c0_15 = arith.constant 0 : index
    %22 = vector.load %arg7[%c0_14, %c0_15] : memref<1x128xf32, #tpu.memory_space<vmem>>, vector<1x128xf32>
    %23 = arith.truncf %20 : vector<8x128xf32> to vector<8x128xbf16>
    %cst_16 = arith.constant dense<0.000000e+00> : vector<8x128xf32>
    %24 = tpu.matmul %23, %21, %cst_16 {dimension_numbers = #tpu.dot_dimension_numbers<[1], [0], [0], [1], [0, 0, 1, 1], [], []>} : vector<8x128xbf16>, vector<128x128xbf16>, vector<8x128xf32> -> vector<8x128xf32>
    %25 = vector.broadcast %22 : vector<1x128xf32> to vector<8x128xf32>
    %26 = arith.addf %24, %25 : vector<8x128xf32>
    %c0_17 = arith.constant 0 : index
    %c0_18 = arith.constant 0 : index
    %27 = vector.load %arg8[%c0_17, %c0_18] : memref<8x128xf32, #tpu.memory_space<vmem>>, vector<8x128xf32>
    tpu.vector_store %arg8[%c0_17, %c0_18], %26 {strides = array<i32>} : memref<8x128xf32, #tpu.memory_space<vmem>>, vector<8x128xf32>,
    return
  }
  func.func @transform_0(%arg0: i32) -> (i32, i32) {
    %c0_i32 = arith.constant 0 : i32
    %c0_i32_0 = arith.constant 0 : i32
    return %arg0, %c0_i32 : i32, i32
  }
  func.func @transform_1(%arg0: i32) -> (i32, i32) {
    %c0_i32 = arith.constant 0 : i32
    %c0_i32_0 = arith.constant 0 : i32
    %c0_i32_1 = arith.constant 0 : i32
    return %c0_i32, %c0_i32_0 : i32, i32
  }
  func.func @transform_2(%arg0: i32) -> (i32, i32) {
    %c0_i32 = arith.constant 0 : i32
    %c0_i32_0 = arith.constant 0 : i32
    %c0_i32_1 = arith.constant 0 : i32
    return %c0_i32, %c0_i32_0 : i32, i32
  }
  func.func @transform_3(%arg0: i32) -> (i32, i32) {
    %c0_i32 = arith.constant 0 : i32
    %c0_i32_0 = arith.constant 0 : i32
    %c0_i32_1 = arith.constant 0 : i32
    return %c0_i32, %c0_i32_0 : i32, i32
  }
  func.func @transform_4(%arg0: i32) -> (i32, i32) {
    %c0_i32 = arith.constant 0 : i32
    %c0_i32_0 = arith.constant 0 : i32
    %c0_i32_1 = arith.constant 0 : i32
    return %c0_i32, %c0_i32_0 : i32, i32
  }
  func.func @transform_5(%arg0: i32) -> (i32, i32) {
    %c0_i32 = arith.constant 0 : i32
    %c0_i32_0 = arith.constant 0 : i32
    %c0_i32_1 = arith.constant 0 : i32
    return %c0_i32, %c0_i32_0 : i32, i32
  }
  func.func @transform_6(%arg0: i32) -> (i32, i32) {
    %c0_i32 = arith.constant 0 : i32
    %c0_i32_0 = arith.constant 0 : i32
    %c0_i32_1 = arith.constant 0 : i32
    return %c0_i32, %c0_i32_0 : i32, i32
  }
  func.func @transform_7(%arg0: i32) -> (i32, i32) {
    %c0_i32 = arith.constant 0 : i32
    %c0_i32_0 = arith.constant 0 : i32
    return %arg0, %c0_i32 : i32, i32
  }
}

</mosaic_0001>

<llo_original>
// kernel: tpu_custom_call.1
$region0: #{tpu_custom_call.1}
  #allocation0 [shape = 'u32[]', space=smem, size = 0x4, offset = 0x4, fixed_abs, tag = 'smem constant byte address 0x4 - core index']
  #allocation1 [shape = 'u32[144,128]{1,0:T(1,128)}', space=vmem, size = 0x12000, scoped, tag = 'internal scratch']
  %s0 = inlined_call_operand.hbm [shape: f32[8,128], index: 0, kind: input, shape index: {}]
  %s1 = inlined_call_operand.hbm [shape: bf16[128,256], index: 1, kind: input, shape index: {}]
  %s2 = inlined_call_operand.hbm [shape: f32[1,256], index: 2, kind: input, shape index: {}]
  %s3 = inlined_call_operand.hbm [shape: bf16[128,128], index: 3, kind: input, shape index: {}]
  %s4 = inlined_call_operand.hbm [shape: f32[1,128], index: 4, kind: input, shape index: {}]
  %s5 = inlined_call_operand.hbm [shape: bf16[128,128], index: 5, kind: input, shape index: {}]
  %s6 = inlined_call_operand.hbm [shape: f32[1,128], index: 6, kind: input, shape index: {}]
  %s7 = inlined_call_operand.hbm [shape: f32[8,128], index: 7, kind: output, shape index: {}]
  %s8 = sld [smem:[#allocation0]]
  $region66: #{tpu_custom_call.1} parent=0
    _
  %s10 = ssub.s32 1, %s8
  %s11 = scalar_select 0, %s10, %s8
  $region1: #{tpu_custom_call.1} parent=0
    #allocation2 [shape = 'u8[4096]{0}', space=vmem, size = 0x1000, scoped, tag = 'input window, operand 0, single buffered']
    #allocation3 [shape = 's32[1]{0}', space=sflag, size = 0x4, scoped, tag = 'scoped memory for tpu_custom_call.1']
    #allocation4 [shape = 's32[1]{0}', space=sflag, size = 0x4, scoped, tag = 'scoped memory for tpu_custom_call.1']
    #allocation5 [shape = 'u8[65536]{0}', space=vmem, size = 0x10000, scoped, tag = 'input window, operand 1, single buffered']
    #allocation6 [shape = 's32[1]{0}', space=sflag, size = 0x4, scoped, tag = 'scoped memory for tpu_custom_call.1']
    #allocation7 [shape = 'u8[1024]{0}', space=vmem, size = 0x400, scoped, tag = 'input window, operand 2, single buffered']
    #allocation8 [shape = 'u8[32768]{0}', space=vmem, size = 0x8000, scoped, tag = 'input window, operand 3, single buffered']
    #allocation9 [shape = 's32[1]{0}', space=sflag, size = 0x4, scoped, tag = 'scoped memory for tpu_custom_call.1']
    #allocation10 [shape = 'u8[512]{0}', space=vmem, size = 0x400, scoped, tag = 'input window, operand 4, single buffered']
    #allocation11 [shape = 'u8[32768]{0}', space=vmem, size = 0x8000, scoped, tag = 'input window, operand 5, single buffered']
    #allocation12 [shape = 's32[1]{0}', space=sflag, size = 0x4, scoped, tag = 'scoped memory for tpu_custom_call.1']
    #allocation13 [shape = 'u8[512]{0}', space=vmem, size = 0x400, scoped, tag = 'input window, operand 6, single buffered']
    #allocation14 [shape = 'u8[4096]{0}', space=vmem, size = 0x1000, scoped, tag = 'output window, operand 0, single buffered']
    %12 = vsyncpa [#allocation3], 0
    %13 = vsyncpa [#allocation6], 0
    %14 = vsyncpa [#allocation9], 0
    %15 = vsyncpa [#allocation12], 0
    %16 = vsyncpa [#allocation4], 0
    // Predicated region
    $region2: #{tpu_custom_call.1} parent=1 // pred_check
      _
    $region3: #{tpu_custom_call.1} parent=1 // pred_check_branch
      %18 = sbr.rel (0) target = $region5
    $region4: #{tpu_custom_call.1} parent=1 // pred_region
      %s20 = ssub.s32 128, 128
      %21 = vsyncadd [#allocation3], %s20
      %s23 = sshll.u32 [#allocation2], 4
      %s24 = int_to_ptr.vmem [resolvable:$true] %s23
      %26 = dma.hbm_to_vmem [thread:$0]  %s0, 128, %s24, [#allocation3]
    $region5: #{tpu_custom_call.1} parent=1 // pred_fallthru
      _
    // Predicated region
    $region6: #{tpu_custom_call.1} parent=1 // pred_check
      _
    $region7: #{tpu_custom_call.1} parent=1 // pred_check_branch
      %28 = sbr.rel (0) target = $region9
    $region8: #{tpu_custom_call.1} parent=1 // pred_region
      %s30 = ssub.s32 2048, 2048
      %31 = vsyncadd [#allocation6], %s30
      %s32 = sshll.u32 [#allocation5], 4
      %s33 = int_to_ptr.vmem [resolvable:$true] %s32
      %38 = dma.hbm_to_vmem [thread:$0]  %s1, 2048, %s33, [#allocation6], 128, 128, 8
    $region9: #{tpu_custom_call.1} parent=1 // pred_fallthru
      _
    // Predicated region
    $region10: #{tpu_custom_call.1} parent=1 // pred_check
      _
    $region11: #{tpu_custom_call.1} parent=1 // pred_check_branch
      %40 = sbr.rel (0) target = $region13
    $region12: #{tpu_custom_call.1} parent=1 // pred_region
      %s42 = ssub.s32 32, 32
      %43 = vsyncadd [#allocation6], %s42
      %s45 = sshll.u32 [#allocation7], 4
      %s46 = int_to_ptr.vmem [resolvable:$true] %s45
      %48 = dma.hbm_to_vmem [thread:$0]  %s2, 32, %s46, [#allocation6]
    $region13: #{tpu_custom_call.1} parent=1 // pred_fallthru
      _
    // Predicated region
    $region14: #{tpu_custom_call.1} parent=1 // pred_check
      _
    $region15: #{tpu_custom_call.1} parent=1 // pred_check_branch
      %50 = sbr.rel (0) target = $region17
    $region16: #{tpu_custom_call.1} parent=1 // pred_region
      %s52 = ssub.s32 1024, 1024
      %53 = vsyncadd [#allocation9], %s52
      %s54 = sshll.u32 [#allocation8], 4
      %s55 = int_to_ptr.vmem [resolvable:$true] %s54
      %60 = dma.hbm_to_vmem [thread:$0]  %s3, 1024, %s55, [#allocation9], 64, 64, 4
    $region17: #{tpu_custom_call.1} parent=1 // pred_fallthru
      _
    // Predicated region
    $region18: #{tpu_custom_call.1} parent=1 // pred_check
      _
    $region19: #{tpu_custom_call.1} parent=1 // pred_check_branch
      %62 = sbr.rel (0) target = $region21
    $region20: #{tpu_custom_call.1} parent=1 // pred_region
      %s64 = ssub.s32 16, 16
      %65 = vsyncadd [#allocation9], %s64
      %s67 = sshll.u32 [#allocation10], 4
      %s68 = int_to_ptr.vmem [resolvable:$true] %s67
      %70 = dma.hbm_to_vmem [thread:$0]  %s4, 16, %s68, [#allocation9]
    $region21: #{tpu_custom_call.1} parent=1 // pred_fallthru
      _
    // Predicated region
    $region22: #{tpu_custom_call.1} parent=1 // pred_check
      _
    $region23: #{tpu_custom_call.1} parent=1 // pred_check_branch
      %72 = sbr.rel (0) target = $region25
    $region24: #{tpu_custom_call.1} parent=1 // pred_region
      %s74 = ssub.s32 1024, 1024
      %75 = vsyncadd [#allocation12], %s74
      %s76 = sshll.u32 [#allocation11], 4
      %s77 = int_to_ptr.vmem [resolvable:$true] %s76
      %82 = dma.hbm_to_vmem [thread:$0]  %s5, 1024, %s77, [#allocation12], 64, 64, 4
    $region25: #{tpu_custom_call.1} parent=1 // pred_fallthru
      _
    // Predicated region
    $region26: #{tpu_custom_call.1} parent=1 // pred_check
      _
    $region27: #{tpu_custom_call.1} parent=1 // pred_check_branch
      %84 = sbr.rel (0) target = $region29
    $region28: #{tpu_custom_call.1} parent=1 // pred_region
      %s86 = ssub.s32 16, 16
      %87 = vsyncadd [#allocation12], %s86
      %s89 = sshll.u32 [#allocation13], 4
      %s90 = int_to_ptr.vmem [resolvable:$true] %s89
      %92 = dma.hbm_to_vmem [thread:$0]  %s6, 16, %s90, [#allocation12]
    $region29: #{tpu_custom_call.1} parent=1 // pred_fallthru
      _
    // Predicated region
    $region30: #{tpu_custom_call.1} parent=1 // pred_check
      _
    $region31: #{tpu_custom_call.1} parent=1 // pred_check_branch
      %94 = sbr.rel (0) target = $region33
    $region32: #{tpu_custom_call.1} parent=1 // pred_region
      %95 = dma.done [#allocation3], 128
    $region33: #{tpu_custom_call.1} parent=1 // pred_fallthru
      _
    // Predicated region
    $region34: #{tpu_custom_call.1} parent=1 // pred_check
      _
    $region35: #{tpu_custom_call.1} parent=1 // pred_check_branch
      %97 = sbr.rel (0) target = $region37
    $region36: #{tpu_custom_call.1} parent=1 // pred_region
      %98 = dma.done [#allocation6], 2048
    $region37: #{tpu_custom_call.1} parent=1 // pred_fallthru
      _
    // Predicated region
    $region38: #{tpu_custom_call.1} parent=1 // pred_check
      _
    $region39: #{tpu_custom_call.1} parent=1 // pred_check_branch
      %100 = sbr.rel (0) target = $region41
    $region40: #{tpu_custom_call.1} parent=1 // pred_region
      %101 = dma.done [#allocation6], 32
    $region41: #{tpu_custom_call.1} parent=1 // pred_fallthru
      _
    // Predicated region
    $region42: #{tpu_custom_call.1} parent=1 // pred_check
      _
    $region43: #{tpu_custom_call.1} parent=1 // pred_check_branch
      %103 = sbr.rel (0) target = $region45
    $region44: #{tpu_custom_call.1} parent=1 // pred_region
      %104 = dma.done [#allocation9], 1024
    $region45: #{tpu_custom_call.1} parent=1 // pred_fallthru
      _
    // Predicated region
    $region46: #{tpu_custom_call.1} parent=1 // pred_check
      _
    $region47: #{tpu_custom_call.1} parent=1 // pred_check_branch
      %106 = sbr.rel (0) target = $region49
    $region48: #{tpu_custom_call.1} parent=1 // pred_region
      %107 = dma.done [#allocation9], 16
    $region49: #{tpu_custom_call.1} parent=1 // pred_fallthru
      _
    // Predicated region
    $region50: #{tpu_custom_call.1} parent=1 // pred_check
      _
    $region51: #{tpu_custom_call.1} parent=1 // pred_check_branch
      %109 = sbr.rel (0) target = $region53
    $region52: #{tpu_custom_call.1} parent=1 // pred_region
      %110 = dma.done [#allocation12], 1024
    $region53: #{tpu_custom_call.1} parent=1 // pred_fallthru
      _
    // Predicated region
    $region54: #{tpu_custom_call.1} parent=1 // pred_check
      _
    $region55: #{tpu_custom_call.1} parent=1 // pred_check_branch
      %112 = sbr.rel (0) target = $region57
    $region56: #{tpu_custom_call.1} parent=1 // pred_region
      %113 = dma.done [#allocation12], 16
    $region57: #{tpu_custom_call.1} parent=1 // pred_fallthru
      _
    %v115 = vld [vmem:[#allocation2] sm:$0xff]
    %v116 = vld [vmem:[#allocation5] sm:$0xff]
    %v117 = vld [vmem:[#allocation5 + $0x8] sm:$0xff]
    %v118 = vld [vmem:[#allocation5 + $0x10] sm:$0xff]
    %v119 = vld [vmem:[#allocation5 + $0x18] sm:$0xff]
    %v120 = vld [vmem:[#allocation5 + $0x20] sm:$0xff]
    %v121 = vld [vmem:[#allocation5 + $0x28] sm:$0xff]
    %v122 = vld [vmem:[#allocation5 + $0x30] sm:$0xff]
    %v123 = vld [vmem:[#allocation5 + $0x38] sm:$0xff]
    %v124 = vld [vmem:[#allocation5 + $0x40] sm:$0xff]
    %v125 = vld [vmem:[#allocation5 + $0x48] sm:$0xff]
    %v126 = vld [vmem:[#allocation5 + $0x50] sm:$0xff]
    %v127 = vld [vmem:[#allocation5 + $0x58] sm:$0xff]
    %v128 = vld [vmem:[#allocation5 + $0x60] sm:$0xff]
    %v129 = vld [vmem:[#allocation5 + $0x68] sm:$0xff]
    %v130 = vld [vmem:[#allocation5 + $0x70] sm:$0xff]
    %v131 = vld [vmem:[#allocation5 + $0x78] sm:$0xff]
    %v132 = vld [vmem:[#allocation7] sm:$0x3]
    %v133 = vpack.c.bf16 %v115, %v115
    %v135 = vlaneseq
    %v136 = vshrl.u32 %v135, 7
    %v137 = vsub.s32 0, %v136
    %v138 = vrot.slane %v132, %v137
    %v139 = vlaneseq
    %v140 = vshrl.u32 %v139, 7
    %v141 = vsub.s32 1, %v140
    %v142 = vrot.slane %v132, %v141
    %v161 = vunpack.c.l.b16 %v116
    %v162 = vunpack.c.h.b16 %v116
    %v163 = vunpack.c.l.b16 %v117
    %v164 = vunpack.c.h.b16 %v117
    %v165 = vunpack.c.l.b16 %v118
    %v166 = vunpack.c.h.b16 %v118
    %v167 = vunpack.c.l.b16 %v119
    %v168 = vunpack.c.h.b16 %v119
    %v169 = vunpack.c.l.b16 %v120
    %v170 = vunpack.c.h.b16 %v120
    %v171 = vunpack.c.l.b16 %v121
    %v172 = vunpack.c.h.b16 %v121
    %v173 = vunpack.c.l.b16 %v122
    %v174 = vunpack.c.h.b16 %v122
    %v175 = vunpack.c.l.b16 %v123
    %v176 = vunpack.c.h.b16 %v123
    %v177 = vunpack.c.l.b16 %v124
    %v178 = vunpack.c.h.b16 %v124
    %v179 = vunpack.c.l.b16 %v125
    %v180 = vunpack.c.h.b16 %v125
    %v181 = vunpack.c.l.b16 %v126
    %v182 = vunpack.c.h.b16 %v126
    %v183 = vunpack.c.l.b16 %v127
    %v184 = vunpack.c.h.b16 %v127
    %v185 = vunpack.c.l.b16 %v128
    %v186 = vunpack.c.h.b16 %v128
    %v187 = vunpack.c.l.b16 %v129
    %v188 = vunpack.c.h.b16 %v129
    %v189 = vunpack.c.l.b16 %v130
    %v190 = vunpack.c.h.b16 %v130
    %v191 = vunpack.c.l.b16 %v131
    %v192 = vunpack.c.h.b16 %v131
    %v193 = vpack.c.b16 %v163, %v161
    %v194 = vpack.c.b16 %v164, %v162
    %v195 = vpack.c.b16 %v167, %v165
    %v196 = vpack.c.b16 %v168, %v166
    %v197 = vpack.c.b16 %v171, %v169
    %v198 = vpack.c.b16 %v172, %v170
    %v199 = vpack.c.b16 %v175, %v173
    %v200 = vpack.c.b16 %v176, %v174
    %v201 = vpack.c.b16 %v179, %v177
    %v202 = vpack.c.b16 %v180, %v178
    %v203 = vpack.c.b16 %v183, %v181
    %v204 = vpack.c.b16 %v184, %v182
    %v205 = vpack.c.b16 %v187, %v185
    %v206 = vpack.c.b16 %v188, %v186
    %v207 = vpack.c.b16 %v191, %v189
    %v208 = vpack.c.b16 %v192, %v190
    %225 = vmatprep.subr.bf16.mxu0 %v194
    %226 = vmatpush1.bf16.msra.mxu0 %v193
    %227 = vmatprep.subr.bf16.mxu0 %v196
    %228 = vmatpush1.bf16.msra.mxu0 %v195
    %229 = vmatprep.subr.bf16.mxu0 %v198
    %230 = vmatpush1.bf16.msra.mxu0 %v197
    %231 = vmatprep.subr.bf16.mxu0 %v200
    %232 = vmatpush1.bf16.msra.mxu0 %v199
    %233 = vmatprep.subr.bf16.mxu0 %v202
    %234 = vmatpush1.bf16.msra.mxu0 %v201
    %235 = vmatprep.subr.bf16.mxu0 %v204
    %236 = vmatpush1.bf16.msra.mxu0 %v203
    %237 = vmatprep.subr.bf16.mxu0 %v206
    %238 = vmatpush1.bf16.msra.mxu0 %v205
    %239 = vmatprep.subr.bf16.mxu0 %v208
    %240 = vmatpush1.bf16.msra.mxu0 %v207
    %241 = vmatprep.subr.bf16.mxu0 0
    %242 = vmatpush1.bf16.msra.mxu0 0
    %243 = vmatprep.subr.bf16.mxu0 0
    %244 = vmatpush1.bf16.msra.mxu0 0
    %245 = vmatprep.subr.bf16.mxu0 0
    %246 = vmatpush1.bf16.msra.mxu0 0
    %247 = vmatprep.subr.bf16.mxu0 0
    %248 = vmatpush1.bf16.msra.mxu0 0
    %249 = vmatprep.subr.bf16.mxu0 0
    %250 = vmatpush1.bf16.msra.mxu0 0
    %251 = vmatprep.subr.bf16.mxu0 0
    %252 = vmatpush1.bf16.msra.mxu0 0
    %253 = vmatprep.subr.bf16.mxu0 0
    %254 = vmatpush1.bf16.msra.mxu0 0
    %255 = vmatprep.subr.bf16.mxu0 0
    %256 = vmatpush1.bf16.msra.mxu0 0
    %257 = vmatprep.mubr.bf16.mxu0 0
    %258 = vmatmul.mubr.bf16.gmra.mrb[0].mxu0 %v133
    %v259 = vpop.f32.mrb[0].mxu0
    %v260 = vadd.f32 %v138, %v259
    %v261 = vpop.f32.mrb[0].mxu0
    %v262 = vadd.f32 %v142, %v261
    %v263 = vpop.f32.mrb[0].mxu0
    %v264 = vpop.f32.mrb[0].mxu0
    %265 = vdwg.mxu0
    %v266 = vmax.f32 %v260, 0.0
    %v267 = vadd.f32 %v266, %v262
    %v268 = vld [vmem:[#allocation8] sm:$0xf]
    %v269 = vld [vmem:[#allocation8 + $0x4] sm:$0xf]
    %v270 = vld [vmem:[#allocation8 + $0x8] sm:$0xf]
    %v271 = vld [vmem:[#allocation8 + $0xc] sm:$0xf]
    %v272 = vld [vmem:[#allocation8 + $0x10] sm:$0xf]
    %v273 = vld [vmem:[#allocation8 + $0x14] sm:$0xf]
    %v274 = vld [vmem:[#allocation8 + $0x18] sm:$0xf]
    %v275 = vld [vmem:[#allocation8 + $0x1c] sm:$0xf]
    %v276 = vld [vmem:[#allocation8 + $0x20] sm:$0xf]
    %v277 = vld [vmem:[#allocation8 + $0x24] sm:$0xf]
    %v278 = vld [vmem:[#allocation8 + $0x28] sm:$0xf]
    %v279 = vld [vmem:[#allocation8 + $0x2c] sm:$0xf]
    %v280 = vld [vmem:[#allocation8 + $0x30] sm:$0xf]
    %v281 = vld [vmem:[#allocation8 + $0x34] sm:$0xf]
    %v282 = vld [vmem:[#allocation8 + $0x38] sm:$0xf]
    %v283 = vld [vmem:[#allocation8 + $0x3c] sm:$0xf]
    %v284 = vld [vmem:[#allocation10] sm:$0x1]
    %v285 = vpack.c.bf16 %v267, %v267
    %v287 = vlaneseq
    %v288 = vshrl.u32 %v287, 7
    %v289 = vsub.s32 0, %v288
    %v290 = vrot.slane %v284, %v289
    %v308 = vunpack.c.l.b16 %v268
    %v309 = vunpack.c.l.b16 %v269
    %v310 = vunpack.c.l.b16 %v270
    %v311 = vunpack.c.l.b16 %v271
    %v312 = vunpack.c.l.b16 %v272
    %v313 = vunpack.c.l.b16 %v273
    %v314 = vunpack.c.l.b16 %v274
    %v315 = vunpack.c.l.b16 %v275
    %v316 = vunpack.c.l.b16 %v276
    %v317 = vunpack.c.l.b16 %v277
    %v318 = vunpack.c.l.b16 %v278
    %v319 = vunpack.c.l.b16 %v279
    %v320 = vunpack.c.l.b16 %v280
    %v321 = vunpack.c.l.b16 %v281
    %v322 = vunpack.c.l.b16 %v282
    %v323 = vunpack.c.l.b16 %v283
    %v324 = vpack.c.b16 %v309, %v308
    %v325 = vpack.c.b16 %v311, %v310
    %v326 = vpack.c.b16 %v313, %v312
    %v327 = vpack.c.b16 %v315, %v314
    %v328 = vpack.c.b16 %v317, %v316
    %v329 = vpack.c.b16 %v319, %v318
    %v330 = vpack.c.b16 %v321, %v320
    %v331 = vpack.c.b16 %v323, %v322
    %340 = vmatprep.subr.bf16.mxu0 0
    %341 = vmatpush1.bf16.msra.mxu0 %v324
    %342 = vmatprep.subr.bf16.mxu0 0
    %343 = vmatpush1.bf16.msra.mxu0 %v325
    %344 = vmatprep.subr.bf16.mxu0 0
    %345 = vmatpush1.bf16.msra.mxu0 %v326
    %346 = vmatprep.subr.bf16.mxu0 0
    %347 = vmatpush1.bf16.msra.mxu0 %v327
    %348 = vmatprep.subr.bf16.mxu0 0
    %349 = vmatpush1.bf16.msra.mxu0 %v328
    %350 = vmatprep.subr.bf16.mxu0 0
    %351 = vmatpush1.bf16.msra.mxu0 %v329
    %352 = vmatprep.subr.bf16.mxu0 0
    %353 = vmatpush1.bf16.msra.mxu0 %v330
    %354 = vmatprep.subr.bf16.mxu0 0
    %355 = vmatpush1.bf16.msra.mxu0 %v331
    %356 = vmatprep.subr.bf16.mxu0 0
    %357 = vmatpush1.bf16.msra.mxu0 0
    %358 = vmatprep.subr.bf16.mxu0 0
    %359 = vmatpush1.bf16.msra.mxu0 0
    %360 = vmatprep.subr.bf16.mxu0 0
    %361 = vmatpush1.bf16.msra.mxu0 0
    %362 = vmatprep.subr.bf16.mxu0 0
    %363 = vmatpush1.bf16.msra.mxu0 0
    %364 = vmatprep.subr.bf16.mxu0 0
    %365 = vmatpush1.bf16.msra.mxu0 0
    %366 = vmatprep.subr.bf16.mxu0 0
    %367 = vmatpush1.bf16.msra.mxu0 0
    %368 = vmatprep.subr.bf16.mxu0 0
    %369 = vmatpush1.bf16.msra.mxu0 0
    %370 = vmatprep.subr.bf16.mxu0 0
    %371 = vmatpush1.bf16.msra.mxu0 0
    %372 = vmatprep.mubr.bf16.mxu0 0
    %373 = vmatmul.mubr.bf16.gmra.mrb[0].mxu0 %v285
    %v374 = vpop.f32.mrb[0].mxu0
    %v375 = vadd.f32 %v290, %v374
    %v376 = vpop.f32.mrb[0].mxu0
    %v377 = vpop.f32.mrb[0].mxu0
    %v378 = vpop.f32.mrb[0].mxu0
    %379 = vdwg.mxu0
    %v380 = vmax.f32 %v375, 0.0
    %v381 = vadd.f32 %v380, %v267
    %v382 = vld [vmem:[#allocation11] sm:$0xf]
    %v383 = vld [vmem:[#allocation11 + $0x4] sm:$0xf]
    %v384 = vld [vmem:[#allocation11 + $0x8] sm:$0xf]
    %v385 = vld [vmem:[#allocation11 + $0xc] sm:$0xf]
    %v386 = vld [vmem:[#allocation11 + $0x10] sm:$0xf]
    %v387 = vld [vmem:[#allocation11 + $0x14] sm:$0xf]
    %v388 = vld [vmem:[#allocation11 + $0x18] sm:$0xf]
    %v389 = vld [vmem:[#allocation11 + $0x1c] sm:$0xf]
    %v390 = vld [vmem:[#allocation11 + $0x20] sm:$0xf]
    %v391 = vld [vmem:[#allocation11 + $0x24] sm:$0xf]
    %v392 = vld [vmem:[#allocation11 + $0x28] sm:$0xf]
    %v393 = vld [vmem:[#allocation11 + $0x2c] sm:$0xf]
    %v394 = vld [vmem:[#allocation11 + $0x30] sm:$0xf]
    %v395 = vld [vmem:[#allocation11 + $0x34] sm:$0xf]
    %v396 = vld [vmem:[#allocation11 + $0x38] sm:$0xf]
    %v397 = vld [vmem:[#allocation11 + $0x3c] sm:$0xf]
    %v398 = vld [vmem:[#allocation13] sm:$0x1]
    %v399 = vpack.c.bf16 %v381, %v381
    %v401 = vlaneseq
    %v402 = vshrl.u32 %v401, 7
    %v403 = vsub.s32 0, %v402
    %v404 = vrot.slane %v398, %v403
    %v422 = vunpack.c.l.b16 %v382
    %v423 = vunpack.c.l.b16 %v383
    %v424 = vunpack.c.l.b16 %v384
    %v425 = vunpack.c.l.b16 %v385
    %v426 = vunpack.c.l.b16 %v386
    %v427 = vunpack.c.l.b16 %v387
    %v428 = vunpack.c.l.b16 %v388
    %v429 = vunpack.c.l.b16 %v389
    %v430 = vunpack.c.l.b16 %v390
    %v431 = vunpack.c.l.b16 %v391
    %v432 = vunpack.c.l.b16 %v392
    %v433 = vunpack.c.l.b16 %v393
    %v434 = vunpack.c.l.b16 %v394
    %v435 = vunpack.c.l.b16 %v395
    %v436 = vunpack.c.l.b16 %v396
    %v437 = vunpack.c.l.b16 %v397
    %v438 = vpack.c.b16 %v423, %v422
    %v439 = vpack.c.b16 %v425, %v424
    %v440 = vpack.c.b16 %v427, %v426
    %v441 = vpack.c.b16 %v429, %v428
    %v442 = vpack.c.b16 %v431, %v430
    %v443 = vpack.c.b16 %v433, %v432
    %v444 = vpack.c.b16 %v435, %v434
    %v445 = vpack.c.b16 %v437, %v436
    %454 = vmatprep.subr.bf16.mxu0 0
    %455 = vmatpush1.bf16.msra.mxu0 %v438
    %456 = vmatprep.subr.bf16.mxu0 0
    %457 = vmatpush1.bf16.msra.mxu0 %v439
    %458 = vmatprep.subr.bf16.mxu0 0
    %459 = vmatpush1.bf16.msra.mxu0 %v440
    %460 = vmatprep.subr.bf16.mxu0 0
    %461 = vmatpush1.bf16.msra.mxu0 %v441
    %462 = vmatprep.subr.bf16.mxu0 0
    %463 = vmatpush1.bf16.msra.mxu0 %v442
    %464 = vmatprep.subr.bf16.mxu0 0
    %465 = vmatpush1.bf16.msra.mxu0 %v443
    %466 = vmatprep.subr.bf16.mxu0 0
    %467 = vmatpush1.bf16.msra.mxu0 %v444
    %468 = vmatprep.subr.bf16.mxu0 0
    %469 = vmatpush1.bf16.msra.mxu0 %v445
    %470 = vmatprep.subr.bf16.mxu0 0
    %471 = vmatpush1.bf16.msra.mxu0 0
    %472 = vmatprep.subr.bf16.mxu0 0
    %473 = vmatpush1.bf16.msra.mxu0 0
    %474 = vmatprep.subr.bf16.mxu0 0
    %475 = vmatpush1.bf16.msra.mxu0 0
    %476 = vmatprep.subr.bf16.mxu0 0
    %477 = vmatpush1.bf16.msra.mxu0 0
    %478 = vmatprep.subr.bf16.mxu0 0
    %479 = vmatpush1.bf16.msra.mxu0 0
    %480 = vmatprep.subr.bf16.mxu0 0
    %481 = vmatpush1.bf16.msra.mxu0 0
    %482 = vmatprep.subr.bf16.mxu0 0
    %483 = vmatpush1.bf16.msra.mxu0 0
    %484 = vmatprep.subr.bf16.mxu0 0
    %485 = vmatpush1.bf16.msra.mxu0 0
    %486 = vmatprep.mubr.bf16.mxu0 0
    %487 = vmatmul.mubr.bf16.gmra.mrb[0].mxu0 %v399
    %v488 = vpop.f32.mrb[0].mxu0
    %v489 = vadd.f32 %v404, %v488
    %v490 = vpop.f32.mrb[0].mxu0
    %v491 = vpop.f32.mrb[0].mxu0
    %v492 = vpop.f32.mrb[0].mxu0
    %493 = vdwg.mxu0
    %494 = vst [vmem:[#allocation14] sm:$0xff] %v489
    // Predicated region
    $region58: #{tpu_custom_call.1} parent=1 // pred_check
      _
    $region59: #{tpu_custom_call.1} parent=1 // pred_check_branch
      %496 = sbr.rel (0) target = $region61
    $region60: #{tpu_custom_call.1} parent=1 // pred_region
      %s498 = ssub.s32 128, 128
      %499 = vsyncadd [#allocation4], %s498
      %s501 = sshll.u32 [#allocation14], 4
      %s502 = int_to_ptr.vmem [resolvable:$true] %s501
      %504 = dma.vmem_to_hbm [thread:$0]  %s502, 128, %s7, [#allocation4]
    $region61: #{tpu_custom_call.1} parent=1 // pred_fallthru
      _
    // Predicated region
    $region62: #{tpu_custom_call.1} parent=1 // pred_check
      _
    $region63: #{tpu_custom_call.1} parent=1 // pred_check_branch
      %506 = sbr.rel (0) target = $region65
    $region64: #{tpu_custom_call.1} parent=1 // pred_region
      %507 = dma.done [#allocation4], 128
    $region65: #{tpu_custom_call.1} parent=1 // pred_fallthru
      _
    %508 = vsyncpa [#allocation3], 1
    %509 = vsyncpa [#allocation6], 1
    %510 = vsyncpa [#allocation9], 1
    %511 = vsyncpa [#allocation12], 1
    %512 = vsyncpa [#allocation4], 1

</llo_original>
